<compile_context>
chip_gen: v7x
topology: tpu7x:2x2x1
jax: 0.10.0
libtpu: 0.0.40
codegen_flags: <defaults>
</compile_context>

<pallas_src>
import jax
import jax.numpy as jnp
from jax.experimental import pallas as pl
from jax.experimental.pallas import tpu as pltpu


def conv_module_kernel(
    x_ref,         # (Bb, T, C) input block, time x channels
    w1_ref,        # (C, 2C)  bf16 pointwise_conv1 weight (both GLU halves)
    b1_ref,        # (1, 2C)  f32  pointwise_conv1 bias
    wdw_ref,       # (K, C)   f32  depthwise weights, tap-major, BN scale folded in
    bn_shift_ref,  # (1, C)   f32  folded BatchNorm shift (incl. depthwise bias)
    w2_ref,        # (C, C)   bf16 pointwise_conv2 weight
    b2_ref,        # (1, C)   f32  pointwise_conv2 bias
    o_ref,         # (Bb, T, C)
):
    Bb, T, C = x_ref.shape
    K = wdw_ref.shape[0]
    pad = (K - 1) // 2
    M = Bb * T

    # pointwise_conv1 (k=1 Conv1d == per-row matmul): one bf16 MXU pass over
    # all Bb*T rows, then GLU via a lane-aligned slice at column C.
    x = x_ref[...].reshape(M, C).astype(jnp.bfloat16)
    h2 = jnp.dot(x, w1_ref[...], preferred_element_type=jnp.float32) + b1_ref[...]
    glu = h2[:, :C] * jax.nn.sigmoid(h2[:, C:])                  # (M, C) f32

    # Depthwise conv along T with "same" zero padding; BN scale already folded
    # into wdw.  Each tap = in-register sublane rotation (XLU) + edge mask
    # (VPU select) + multiply-accumulate.  No VMEM staging / scratch zeroing.
    w_rows = [wdw_ref[pl.ds(j, 1), :] for j in range(K)]         # K x (1, C)
    t2d = jax.lax.broadcasted_iota(jnp.int32, (T, C), 0)         # within-sequence time idx
    t_idx = t2d if Bb == 1 else jnp.concatenate([t2d] * Bb, axis=0)   # (M, C)

    acc = glu * w_rows[pad]                                      # centre tap (shift 0)
    for j in range(K):                                           # static unroll
        s = j - pad
        if s == 0:
            continue
        rolled = pltpu.roll(glu, (-s) % M, axis=0)               # rolled[p] = glu[(p + s) mod M]
        mask = (t_idx < T - s) if s > 0 else (t_idx >= -s)       # zero-pad boundary per sequence
        acc = acc + jnp.where(mask, rolled, 0.0) * w_rows[j]

    # Folded BatchNorm shift + SiLU.
    h = acc + bn_shift_ref[...]
    h = h * jax.nn.sigmoid(h)

    # pointwise_conv2 (bf16 MXU, f32 accumulate).
    out = jnp.dot(h.astype(jnp.bfloat16), w2_ref[...],
                  preferred_element_type=jnp.float32) + b2_ref[...]
    o_ref[...] = out.reshape(Bb, T, C).astype(o_ref.dtype)


def conformer_convolution_module(
    x,                 # (B, T, C)
    w1, b1,            # pointwise_conv1: (2C, C, 1), (2C,)
    w_dw, b_dw,        # depthwise_conv:  (C, 1, K), (C,)
    gamma, beta,       # BatchNorm1d weight/bias: (C,), (C,)
    running_mean, running_var,  # BatchNorm1d running stats: (C,), (C,)
    w2, b2,            # pointwise_conv2: (C, C, 1), (C,)
    *,
    eps: float = 1e-5,
    block_batch=None,  # batch rows fused per grid step (auto: target >=256 matmul rows)
):
    B, T, C = x.shape
    K = w_dw.shape[2]
    assert w1.shape == (2 * C, C, 1)
    assert w_dw.shape == (C, 1, K)
    assert w2.shape == (C, C, 1)
    assert K % 2 == 1, "reference module's 'same' padding assumes odd kernel_size"

    # Host-side glue: k=1 Conv1d weights -> (C_in, C_out) bf16 matrices,
    # depthwise weight -> tap-major with the BatchNorm scale folded in, and
    # depthwise bias + BatchNorm mean/beta folded into a single shift.
    w1_mat = jnp.transpose(w1[:, :, 0], (1, 0)).astype(jnp.bfloat16)          # (C, 2C)
    b1r = b1.reshape(1, 2 * C).astype(jnp.float32)
    inv_std = 1.0 / jnp.sqrt(running_var.astype(jnp.float32) + eps)
    bn_scale = gamma.astype(jnp.float32) * inv_std                             # (C,)
    wdw = (jnp.transpose(w_dw[:, 0, :], (1, 0)) * bn_scale[None, :]).astype(jnp.float32)  # (K, C)
    bn_shift = (beta + (b_dw - running_mean) * bn_scale).reshape(1, C).astype(jnp.float32)
    w2_mat = jnp.transpose(w2[:, :, 0], (1, 0)).astype(jnp.bfloat16)          # (C, C)
    b2r = b2.reshape(1, C).astype(jnp.float32)

    # Batch blocking: short sequences badly under-fill the MXU, so fuse enough
    # batch rows per grid step to target >= 256 matmul rows (subject to B and
    # divisibility).  For v7x megacore, pass block_batch explicitly to keep the
    # grid length >= number of TensorCores when B allows it.
    if block_batch is None:
        if T % 8 != 0:
            block_batch = 1          # keep per-sequence row offsets sublane-aligned
        else:
            block_batch = min(B, max(1, pl.cdiv(256, T)))
            while B % block_batch != 0:
                block_batch -= 1
    Bb = block_batch
    assert B % Bb == 0 and Bb >= 1
    if Bb > 1:
        assert T % 8 == 0

    const = lambda i: (0, 0)
    per_block = lambda i: (i, 0, 0)

    return pl.pallas_call(
        conv_module_kernel,
        out_shape=jax.ShapeDtypeStruct((B, T, C), x.dtype),
        grid_spec=pltpu.PrefetchScalarGridSpec(
            num_scalar_prefetch=0,
            grid=(B // Bb,),
            in_specs=[
                pl.BlockSpec((Bb, T, C), per_block),   # x
                pl.BlockSpec((C, 2 * C), const),       # w1 (both GLU halves, bf16)
                pl.BlockSpec((1, 2 * C), const),       # b1
                pl.BlockSpec((K, C), const),           # depthwise weights (BN-scaled)
                pl.BlockSpec((1, C), const),           # folded BN shift
                pl.BlockSpec((C, C), const),           # w2 (bf16)
                pl.BlockSpec((1, C), const),           # b2
            ],
            out_specs=pl.BlockSpec((Bb, T, C), per_block),
        ),
        compiler_params=pltpu.CompilerParams(
            dimension_semantics=("parallel",),
        ),
    )(x, w1_mat, b1r, wdw, bn_shift, w2_mat, b2r)


if __name__ == "__main__":
    # Small but lane-friendly shapes: hidden_size C=128 (one full lane width),
    # seq T=16, batch B=2, depthwise kernel_size K=7 (odd, like the real 31).
    B, T, C, K = 2, 16, 128, 7

    key = jax.random.PRNGKey(0)
    ks = jax.random.split(key, 12)

    x = jax.random.normal(ks[0], (B, T, C), dtype=jnp.float32)
    w1 = jax.random.normal(ks[1], (2 * C, C, 1), dtype=jnp.float32) * 0.05
    b1 = jax.random.normal(ks[2], (2 * C,), dtype=jnp.float32) * 0.05
    w_dw = jax.random.normal(ks[3], (C, 1, K), dtype=jnp.float32) * 0.05
    b_dw = jax.random.normal(ks[4], (C,), dtype=jnp.float32) * 0.05
    gamma = 1.0 + 0.1 * jax.random.normal(ks[5], (C,), dtype=jnp.float32)
    beta = 0.1 * jax.random.normal(ks[6], (C,), dtype=jnp.float32)
    running_mean = 0.1 * jax.random.normal(ks[7], (C,), dtype=jnp.float32)
    running_var = 1.0 + 0.1 * jnp.abs(jax.random.normal(ks[8], (C,), dtype=jnp.float32))
    w2 = jax.random.normal(ks[9], (C, C, 1), dtype=jnp.float32) * 0.05
    b2 = jax.random.normal(ks[10], (C,), dtype=jnp.float32) * 0.05

    out = conformer_convolution_module(
        x, w1, b1, w_dw, b_dw, gamma, beta, running_mean, running_var, w2, b2
    )
    out = jax.block_until_ready(out)

    # Pure-JAX f32 reference (same math as the PyTorch module in eval mode).
    eps = 1e-5
    h = jnp.einsum("btc,oc->bto", x, w1[:, :, 0]) + b1           # (B, T, 2C)
    h = h[..., :C] * jax.nn.sigmoid(h[..., C:])                  # GLU(dim=channels)
    pad = (K - 1) // 2
    hp = jnp.pad(h, ((0, 0), (pad, pad), (0, 0)))
    dw = jnp.zeros_like(h)
    for j in range(K):
        dw = dw + hp[:, j:j + T, :] * w_dw[:, 0, j]
    dw = dw + b_dw
    bn = (dw - running_mean) / jnp.sqrt(running_var + eps) * gamma + beta
    bn = bn * jax.nn.sigmoid(bn)                                 # SiLU
    ref = jnp.einsum("btc,oc->bto", bn, w2[:, :, 0]) + b2

    assert out.shape == (B, T, C)
    max_err = float(jnp.max(jnp.abs(out - ref)))
    # bf16 MXU operands vs an all-f32 reference -> allow a few e-3 of slack.
    assert max_err < 2e-2, f"max abs err {max_err}"

    print("KERNEL_OK")
</pallas_src>

<mosaic_0001>
module attributes {stable_mosaic.version = 11 : i64} {
  func.func @conv_module_kernel(%arg0: i32, %arg1: memref<2x16x128xf32, #tpu.memory_space<vmem>>, %arg2: memref<128x256xbf16, #tpu.memory_space<vmem>>, %arg3: memref<1x256xf32, #tpu.memory_space<vmem>>, %arg4: memref<7x128xf32, #tpu.memory_space<vmem>>, %arg5: memref<1x128xf32, #tpu.memory_space<vmem>>, %arg6: memref<128x128xbf16, #tpu.memory_space<vmem>>, %arg7: memref<1x128xf32, #tpu.memory_space<vmem>>, %arg8: memref<2x16x128xf32, #tpu.memory_space<vmem>>) attributes {dimension_semantics = [#tpu.dimension_semantics<parallel>], iteration_bounds = array<i64: 1>, scalar_prefetch = 0 : i64, scratch_operands = 0 : i64, tpu.core_type = #tpu.core_type<tc>, window_params = [{transform_indices = @transform_0, window_bounds = array<i64: 2, 16, 128>}, {pipeline_mode = #tpu.pipeline_mode<synchronous>, transform_indices = @transform_1, window_bounds = array<i64: 128, 256>}, {pipeline_mode = #tpu.pipeline_mode<synchronous>, transform_indices = @transform_2, window_bounds = array<i64: 1, 256>}, {pipeline_mode = #tpu.pipeline_mode<synchronous>, transform_indices = @transform_3, window_bounds = array<i64: 7, 128>}, {pipeline_mode = #tpu.pipeline_mode<synchronous>, transform_indices = @transform_4, window_bounds = array<i64: 1, 128>}, {pipeline_mode = #tpu.pipeline_mode<synchronous>, transform_indices = @transform_5, window_bounds = array<i64: 128, 128>}, {pipeline_mode = #tpu.pipeline_mode<synchronous>, transform_indices = @transform_6, window_bounds = array<i64: 1, 128>}, {transform_indices = @transform_7, window_bounds = array<i64: 2, 16, 128>}]} {
    %c0 = arith.constant 0 : index
    %c0_0 = arith.constant 0 : index
    %c0_1 = arith.constant 0 : index
    %0 = vector.load %arg1[%c0, %c0_0, %c0_1] : memref<2x16x128xf32, #tpu.memory_space<vmem>>, vector<2x16x128xf32>
    %1 = vector.shape_cast %0 : vector<2x16x128xf32> to vector<32x128xf32>
    %2 = arith.truncf %1 : vector<32x128xf32> to vector<32x128xbf16>
    %c0_2 = arith.constant 0 : index
    %c0_3 = arith.constant 0 : index
    %3 = vector.load %arg2[%c0_2, %c0_3] : memref<128x256xbf16, #tpu.memory_space<vmem>>, vector<128x256xbf16>
    %cst = arith.constant dense<0.000000e+00> : vector<32x256xf32>
    %4 = tpu.matmul %2, %3, %cst {dimension_numbers = #tpu.dot_dimension_numbers<[1], [0], [0], [1], [0, 0, 1, 1], [], []>} : vector<32x128xbf16>, vector<128x256xbf16>, vector<32x256xf32> -> vector<32x256xf32>
    %c0_4 = arith.constant 0 : index
    %c0_5 = arith.constant 0 : index
    %5 = vector.load %arg3[%c0_4, %c0_5] : memref<1x256xf32, #tpu.memory_space<vmem>>, vector<1x256xf32>
    %6 = vector.broadcast %5 : vector<1x256xf32> to vector<32x256xf32>
    %7 = arith.addf %4, %6 : vector<32x256xf32>
    %8 = vector.extract_strided_slice %7 {offsets = [0, 0], sizes = [32, 128], strides = [1, 1]} : vector<32x256xf32> to vector<32x128xf32>
    %9 = vector.extract_strided_slice %7 {offsets = [0, 128], sizes = [32, 128], strides = [1, 1]} : vector<32x256xf32> to vector<32x128xf32>
    %10 = arith.negf %9 : vector<32x128xf32>
    %11 = math.exp %10 : vector<32x128xf32>
    %cst_6 = arith.constant 1.000000e+00 : f32
    %12 = vector.broadcast %cst_6 : f32 to vector<32x128xf32>
    %13 = arith.addf %12, %11 : vector<32x128xf32>
    %14 = arith.divf %12, %13 : vector<32x128xf32>
    %15 = arith.mulf %8, %14 : vector<32x128xf32>
    %c0_7 = arith.constant 0 : index
    %c0_8 = arith.constant 0 : index
    %16 = vector.load %arg4[%c0_7, %c0_8] : memref<7x128xf32, #tpu.memory_space<vmem>>, vector<1x128xf32>
    %c1 = arith.constant 1 : index
    %c0_9 = arith.constant 0 : index
    %17 = vector.load %arg4[%c1, %c0_9] : memref<7x128xf32, #tpu.memory_space<vmem>>, vector<1x128xf32>
    %c2 = arith.constant 2 : index
    %c0_10 = arith.constant 0 : index
    %18 = vector.load %arg4[%c2, %c0_10] : memref<7x128xf32, #tpu.memory_space<vmem>>, vector<1x128xf32>
    %c3 = arith.constant 3 : index
    %c0_11 = arith.constant 0 : index
    %19 = vector.load %arg4[%c3, %c0_11] : memref<7x128xf32, #tpu.memory_space<vmem>>, vector<1x128xf32>
    %c4 = arith.constant 4 : index
    %c0_12 = arith.constant 0 : index
    %20 = vector.load %arg4[%c4, %c0_12] : memref<7x128xf32, #tpu.memory_space<vmem>>, vector<1x128xf32>
    %c5 = arith.constant 5 : index
    %c0_13 = arith.constant 0 : index
    %21 = vector.load %arg4[%c5, %c0_13] : memref<7x128xf32, #tpu.memory_space<vmem>>, vector<1x128xf32>
    %c6 = arith.constant 6 : index
    %c0_14 = arith.constant 0 : index
    %22 = vector.load %arg4[%c6, %c0_14] : memref<7x128xf32, #tpu.memory_space<vmem>>, vector<1x128xf32>
    %23 = tpu.iota {dimensions = array<i32: 0>} : vector<16x128xi32>
    %24 = tpu.concatenate %23, %23 in 0 : vector<16x128xi32>, vector<16x128xi32> -> vector<32x128xi32>
    %25 = vector.broadcast %19 : vector<1x128xf32> to vector<32x128xf32>
    %26 = arith.mulf %15, %25 : vector<32x128xf32>
    %c3_i32 = arith.constant 3 : i32
    %27 = tpu.dynamic_rotate %15 by %c3_i32 dim 0 : vector<32x128xf32>, i32 -> vector<32x128xf32>
    %c3_i32_15 = arith.constant 3 : i32
    %28 = vector.broadcast %c3_i32_15 : i32 to vector<32x128xi32>
    %29 = arith.cmpi sge, %24, %28 : vector<32x128xi32>
    %cst_16 = arith.constant 0.000000e+00 : f32
    %30 = vector.broadcast %cst_16 : f32 to vector<32x128xf32>
    %31 = arith.select %29, %27, %30 : vector<32x128xi1>, vector<32x128xf32>
    %32 = vector.broadcast %16 : vector<1x128xf32> to vector<32x128xf32>
    %33 = arith.mulf %31, %32 : vector<32x128xf32>
    %34 = arith.addf %26, %33 : vector<32x128xf32>
    %c2_i32 = arith.constant 2 : i32
    %35 = tpu.dynamic_rotate %15 by %c2_i32 dim 0 : vector<32x128xf32>, i32 -> vector<32x128xf32>
    %c2_i32_17 = arith.constant 2 : i32
    %36 = vector.broadcast %c2_i32_17 : i32 to vector<32x128xi32>
    %37 = arith.cmpi sge, %24, %36 : vector<32x128xi32>
    %cst_18 = arith.constant 0.000000e+00 : f32
    %38 = vector.broadcast %cst_18 : f32 to vector<32x128xf32>
    %39 = arith.select %37, %35, %38 : vector<32x128xi1>, vector<32x128xf32>
    %40 = vector.broadcast %17 : vector<1x128xf32> to vector<32x128xf32>
    %41 = arith.mulf %39, %40 : vector<32x128xf32>
    %42 = arith.addf %34, %41 : vector<32x128xf32>
    %c1_i32 = arith.constant 1 : i32
    %43 = tpu.dynamic_rotate %15 by %c1_i32 dim 0 : vector<32x128xf32>, i32 -> vector<32x128xf32>
    %c1_i32_19 = arith.constant 1 : i32
    %44 = vector.broadcast %c1_i32_19 : i32 to vector<32x128xi32>
    %45 = arith.cmpi sge, %24, %44 : vector<32x128xi32>
    %cst_20 = arith.constant 0.000000e+00 : f32
    %46 = vector.broadcast %cst_20 : f32 to vector<32x128xf32>
    %47 = arith.select %45, %43, %46 : vector<32x128xi1>, vector<32x128xf32>
    %48 = vector.broadcast %18 : vector<1x128xf32> to vector<32x128xf32>
    %49 = arith.mulf %47, %48 : vector<32x128xf32>
    %50 = arith.addf %42, %49 : vector<32x128xf32>
    %c31_i32 = arith.constant 31 : i32
    %51 = tpu.dynamic_rotate %15 by %c31_i32 dim 0 : vector<32x128xf32>, i32 -> vector<32x128xf32>
    %c15_i32 = arith.constant 15 : i32
    %52 = vector.broadcast %c15_i32 : i32 to vector<32x128xi32>
    %53 = arith.cmpi slt, %24, %52 : vector<32x128xi32>
    %cst_21 = arith.constant 0.000000e+00 : f32
    %54 = vector.broadcast %cst_21 : f32 to vector<32x128xf32>
    %55 = arith.select %53, %51, %54 : vector<32x128xi1>, vector<32x128xf32>
    %56 = vector.broadcast %20 : vector<1x128xf32> to vector<32x128xf32>
    %57 = arith.mulf %55, %56 : vector<32x128xf32>
    %58 = arith.addf %50, %57 : vector<32x128xf32>
    %c30_i32 = arith.constant 30 : i32
    %59 = tpu.dynamic_rotate %15 by %c30_i32 dim 0 : vector<32x128xf32>, i32 -> vector<32x128xf32>
    %c14_i32 = arith.constant 14 : i32
    %60 = vector.broadcast %c14_i32 : i32 to vector<32x128xi32>
    %61 = arith.cmpi slt, %24, %60 : vector<32x128xi32>
    %cst_22 = arith.constant 0.000000e+00 : f32
    %62 = vector.broadcast %cst_22 : f32 to vector<32x128xf32>
    %63 = arith.select %61, %59, %62 : vector<32x128xi1>, vector<32x128xf32>
    %64 = vector.broadcast %21 : vector<1x128xf32> to vector<32x128xf32>
    %65 = arith.mulf %63, %64 : vector<32x128xf32>
    %66 = arith.addf %58, %65 : vector<32x128xf32>
    %c29_i32 = arith.constant 29 : i32
    %67 = tpu.dynamic_rotate %15 by %c29_i32 dim 0 : vector<32x128xf32>, i32 -> vector<32x128xf32>
    %c13_i32 = arith.constant 13 : i32
    %68 = vector.broadcast %c13_i32 : i32 to vector<32x128xi32>
    %69 = arith.cmpi slt, %24, %68 : vector<32x128xi32>
    %cst_23 = arith.constant 0.000000e+00 : f32
    %70 = vector.broadcast %cst_23 : f32 to vector<32x128xf32>
    %71 = arith.select %69, %67, %70 : vector<32x128xi1>, vector<32x128xf32>
    %72 = vector.broadcast %22 : vector<1x128xf32> to vector<32x128xf32>
    %73 = arith.mulf %71, %72 : vector<32x128xf32>
    %74 = arith.addf %66, %73 : vector<32x128xf32>
    %c0_24 = arith.constant 0 : index
    %c0_25 = arith.constant 0 : index
    %75 = vector.load %arg5[%c0_24, %c0_25] : memref<1x128xf32, #tpu.memory_space<vmem>>, vector<1x128xf32>
    %76 = vector.broadcast %75 : vector<1x128xf32> to vector<32x128xf32>
    %77 = arith.addf %74, %76 : vector<32x128xf32>
    %78 = arith.negf %77 : vector<32x128xf32>
    %79 = math.exp %78 : vector<32x128xf32>
    %cst_26 = arith.constant 1.000000e+00 : f32
    %80 = vector.broadcast %cst_26 : f32 to vector<32x128xf32>
    %81 = arith.addf %80, %79 : vector<32x128xf32>
    %82 = arith.divf %80, %81 : vector<32x128xf32>
    %83 = arith.mulf %77, %82 : vector<32x128xf32>
    %84 = arith.truncf %83 : vector<32x128xf32> to vector<32x128xbf16>
    %c0_27 = arith.constant 0 : index
    %c0_28 = arith.constant 0 : index
    %85 = vector.load %arg6[%c0_27, %c0_28] : memref<128x128xbf16, #tpu.memory_space<vmem>>, vector<128x128xbf16>
    %cst_29 = arith.constant dense<0.000000e+00> : vector<32x128xf32>
    %86 = tpu.matmul %84, %85, %cst_29 {dimension_numbers = #tpu.dot_dimension_numbers<[1], [0], [0], [1], [0, 0, 1, 1], [], []>} : vector<32x128xbf16>, vector<128x128xbf16>, vector<32x128xf32> -> vector<32x128xf32>
    %c0_30 = arith.constant 0 : index
    %c0_31 = arith.constant 0 : index
    %87 = vector.load %arg7[%c0_30, %c0_31] : memref<1x128xf32, #tpu.memory_space<vmem>>, vector<1x128xf32>
    %88 = vector.broadcast %87 : vector<1x128xf32> to vector<32x128xf32>
    %89 = arith.addf %86, %88 : vector<32x128xf32>
    %90 = vector.shape_cast %89 : vector<32x128xf32> to vector<2x16x128xf32>
    %c0_32 = arith.constant 0 : index
    %c0_33 = arith.constant 0 : index
    %c0_34 = arith.constant 0 : index
    %91 = vector.load %arg8[%c0_32, %c0_33, %c0_34] : memref<2x16x128xf32, #tpu.memory_space<vmem>>, vector<2x16x128xf32>
    tpu.vector_store %arg8[%c0_32, %c0_33, %c0_34], %90 {strides = array<i32>} : memref<2x16x128xf32, #tpu.memory_space<vmem>>, vector<2x16x128xf32>,
    return
  }
  func.func @transform_0(%arg0: i32) -> (i32, i32, i32) {
    %c0_i32 = arith.constant 0 : i32
    %c0_i32_0 = arith.constant 0 : i32
    %c0_i32_1 = arith.constant 0 : i32
    return %arg0, %c0_i32, %c0_i32_0 : i32, i32, i32
  }
  func.func @transform_1(%arg0: i32) -> (i32, i32) {
    %c0_i32 = arith.constant 0 : i32
    %c0_i32_0 = arith.constant 0 : i32
    %c0_i32_1 = arith.constant 0 : i32
    return %c0_i32, %c0_i32_0 : i32, i32
  }
  func.func @transform_2(%arg0: i32) -> (i32, i32) {
    %c0_i32 = arith.constant 0 : i32
    %c0_i32_0 = arith.constant 0 : i32
    %c0_i32_1 = arith.constant 0 : i32
    return %c0_i32, %c0_i32_0 : i32, i32
  }
  func.func @transform_3(%arg0: i32) -> (i32, i32) {
    %c0_i32 = arith.constant 0 : i32
    %c0_i32_0 = arith.constant 0 : i32
    %c0_i32_1 = arith.constant 0 : i32
    return %c0_i32, %c0_i32_0 : i32, i32
  }
  func.func @transform_4(%arg0: i32) -> (i32, i32) {
    %c0_i32 = arith.constant 0 : i32
    %c0_i32_0 = arith.constant 0 : i32
    %c0_i32_1 = arith.constant 0 : i32
    return %c0_i32, %c0_i32_0 : i32, i32
  }
  func.func @transform_5(%arg0: i32) -> (i32, i32) {
    %c0_i32 = arith.constant 0 : i32
    %c0_i32_0 = arith.constant 0 : i32
    %c0_i32_1 = arith.constant 0 : i32
    return %c0_i32, %c0_i32_0 : i32, i32
  }
  func.func @transform_6(%arg0: i32) -> (i32, i32) {
    %c0_i32 = arith.constant 0 : i32
    %c0_i32_0 = arith.constant 0 : i32
    %c0_i32_1 = arith.constant 0 : i32
    return %c0_i32, %c0_i32_0 : i32, i32
  }
  func.func @transform_7(%arg0: i32) -> (i32, i32, i32) {
    %c0_i32 = arith.constant 0 : i32
    %c0_i32_0 = arith.constant 0 : i32
    %c0_i32_1 = arith.constant 0 : i32
    return %arg0, %c0_i32, %c0_i32_0 : i32, i32, i32
  }
}

</mosaic_0001>

<llo_original>
// kernel: tpu_custom_call.1
$region0: #{tpu_custom_call.1}
  #allocation0 [shape = 'u32[]', space=smem, size = 0x4, offset = 0x4, fixed_abs, tag = 'smem constant byte address 0x4 - core index']
  #allocation1 [shape = 'u32[144,128]{1,0:T(1,128)}', space=vmem, size = 0x12000, scoped, tag = 'internal scratch']
  %s0 = inlined_call_operand.hbm [shape: f32[2,16,128], index: 0, kind: input, shape index: {}]
  %s1 = inlined_call_operand.hbm [shape: bf16[128,256], index: 1, kind: input, shape index: {}]
  %s2 = inlined_call_operand.vmem [shape: f32[1,256], index: 2, kind: input, shape index: {}]
  %s3 = inlined_call_operand.vmem [shape: f32[7,128], index: 3, kind: input, shape index: {}]
  %s4 = inlined_call_operand.vmem [shape: f32[1,128], index: 4, kind: input, shape index: {}]
  %s5 = inlined_call_operand.hbm [shape: bf16[128,128], index: 5, kind: input, shape index: {}]
  %s6 = inlined_call_operand.vmem [shape: f32[1,128], index: 6, kind: input, shape index: {}]
  %s7 = inlined_call_operand.hbm [shape: f32[2,16,128], index: 7, kind: output, shape index: {}]
  %s8 = sld [smem:[#allocation0]]
  $region50: #{tpu_custom_call.1} parent=0
    _
  %s10 = ssub.s32 1, %s8
  %s11 = scalar_select 0, %s10, %s8
  $region1: #{tpu_custom_call.1} parent=0
    #allocation2 [shape = 'u8[16384]{0}', space=vmem, size = 0x4000, scoped, tag = 'input window, operand 0, single buffered']
    #allocation3 [shape = 's32[1]{0}', space=sflag, size = 0x4, scoped, tag = 'scoped memory for tpu_custom_call.1']
    #allocation4 [shape = 's32[1]{0}', space=sflag, size = 0x4, scoped, tag = 'scoped memory for tpu_custom_call.1']
    #allocation5 [shape = 'u8[65536]{0}', space=vmem, size = 0x10000, scoped, tag = 'input window, operand 1, single buffered']
    #allocation6 [shape = 's32[1]{0}', space=sflag, size = 0x4, scoped, tag = 'scoped memory for tpu_custom_call.1']
    #allocation7 [shape = 'u8[32768]{0}', space=vmem, size = 0x8000, scoped, tag = 'input window, operand 5, single buffered']
    #allocation8 [shape = 'u8[16384]{0}', space=vmem, size = 0x4000, scoped, tag = 'output window, operand 0, single buffered']
    %12 = vsyncpa [#allocation3], 0
    %13 = vsyncpa [#allocation6], 0
    %14 = vsyncpa [#allocation4], 0
    // Predicated region
    $region2: #{tpu_custom_call.1} parent=1 // pred_check
      _
    $region3: #{tpu_custom_call.1} parent=1 // pred_check_branch
      %16 = sbr.rel (0) target = $region5
    $region4: #{tpu_custom_call.1} parent=1 // pred_region
      %s18 = ssub.s32 512, 512
      %19 = vsyncadd [#allocation3], %s18
      %s20 = sshll.u32 [#allocation2], 4
      %s21 = int_to_ptr.vmem [resolvable:$true] %s20
      %26 = dma.hbm_to_vmem [thread:$0]  %s0, 512, %s21, [#allocation3], 128, 128, 8
    $region5: #{tpu_custom_call.1} parent=1 // pred_fallthru
      _
    // Predicated region
    $region6: #{tpu_custom_call.1} parent=1 // pred_check
      _
    $region7: #{tpu_custom_call.1} parent=1 // pred_check_branch
      %28 = sbr.rel (0) target = $region9
    $region8: #{tpu_custom_call.1} parent=1 // pred_region
      %s30 = ssub.s32 2048, 2048
      %31 = vsyncadd [#allocation6], %s30
      %s32 = sshll.u32 [#allocation5], 4
      %s33 = int_to_ptr.vmem [resolvable:$true] %s32
      %38 = dma.hbm_to_vmem [thread:$0]  %s1, 2048, %s33, [#allocation6], 128, 128, 8
    $region9: #{tpu_custom_call.1} parent=1 // pred_fallthru
      _
    // Predicated region
    $region10: #{tpu_custom_call.1} parent=1 // pred_check
      _
    $region11: #{tpu_custom_call.1} parent=1 // pred_check_branch
      %40 = sbr.rel (0) target = $region13
    $region12: #{tpu_custom_call.1} parent=1 // pred_region
      _
    $region13: #{tpu_custom_call.1} parent=1 // pred_fallthru
      _
    // Predicated region
    $region14: #{tpu_custom_call.1} parent=1 // pred_check
      _
    $region15: #{tpu_custom_call.1} parent=1 // pred_check_branch
      %42 = sbr.rel (0) target = $region17
    $region16: #{tpu_custom_call.1} parent=1 // pred_region
      _
    $region17: #{tpu_custom_call.1} parent=1 // pred_fallthru
      _
    // Predicated region
    $region18: #{tpu_custom_call.1} parent=1 // pred_check
      _
    $region19: #{tpu_custom_call.1} parent=1 // pred_check_branch
      %44 = sbr.rel (0) target = $region21
    $region20: #{tpu_custom_call.1} parent=1 // pred_region
      _
    $region21: #{tpu_custom_call.1} parent=1 // pred_fallthru
      _
    // Predicated region
    $region22: #{tpu_custom_call.1} parent=1 // pred_check
      _
    $region23: #{tpu_custom_call.1} parent=1 // pred_check_branch
      %46 = sbr.rel (0) target = $region25
    $region24: #{tpu_custom_call.1} parent=1 // pred_region
      %s48 = ssub.s32 1024, 1024
      %49 = vsyncadd [#allocation6], %s48
      %s50 = sshll.u32 [#allocation7], 4
      %s51 = int_to_ptr.vmem [resolvable:$true] %s50
      %56 = dma.hbm_to_vmem [thread:$0]  %s5, 1024, %s51, [#allocation6], 64, 64, 4
    $region25: #{tpu_custom_call.1} parent=1 // pred_fallthru
      _
    // Predicated region
    $region26: #{tpu_custom_call.1} parent=1 // pred_check
      _
    $region27: #{tpu_custom_call.1} parent=1 // pred_check_branch
      %58 = sbr.rel (0) target = $region29
    $region28: #{tpu_custom_call.1} parent=1 // pred_region
      _
    $region29: #{tpu_custom_call.1} parent=1 // pred_fallthru
      _
    // Predicated region
    $region30: #{tpu_custom_call.1} parent=1 // pred_check
      _
    $region31: #{tpu_custom_call.1} parent=1 // pred_check_branch
      %60 = sbr.rel (0) target = $region33
    $region32: #{tpu_custom_call.1} parent=1 // pred_region
      %61 = dma.done [#allocation3], 512
    $region33: #{tpu_custom_call.1} parent=1 // pred_fallthru
      _
    // Predicated region
    $region34: #{tpu_custom_call.1} parent=1 // pred_check
      _
    $region35: #{tpu_custom_call.1} parent=1 // pred_check_branch
      %63 = sbr.rel (0) target = $region37
    $region36: #{tpu_custom_call.1} parent=1 // pred_region
      %64 = dma.done [#allocation6], 2048
    $region37: #{tpu_custom_call.1} parent=1 // pred_fallthru
      _
    // Predicated region
    $region38: #{tpu_custom_call.1} parent=1 // pred_check
      _
    $region39: #{tpu_custom_call.1} parent=1 // pred_check_branch
      %66 = sbr.rel (0) target = $region41
    $region40: #{tpu_custom_call.1} parent=1 // pred_region
      %67 = dma.done [#allocation6], 1024
    $region41: #{tpu_custom_call.1} parent=1 // pred_fallthru
      _
    %v69 = vld [vmem:[#allocation2] sm:$0xff]
    %v70 = vld [vmem:[#allocation2 + $0x8] sm:$0xff]
    %v71 = vld [vmem:[#allocation2 + $0x10] sm:$0xff]
    %v72 = vld [vmem:[#allocation2 + $0x18] sm:$0xff]
    %v73 = vpack.c.bf16 %v70, %v69
    %v74 = vpack.c.bf16 %v72, %v71
    %v75 = vld [vmem:[#allocation5] sm:$0xff]
    %v76 = vld [vmem:[#allocation5 + $0x8] sm:$0xff]
    %v77 = vld [vmem:[#allocation5 + $0x10] sm:$0xff]
    %v78 = vld [vmem:[#allocation5 + $0x18] sm:$0xff]
    %v79 = vld [vmem:[#allocation5 + $0x20] sm:$0xff]
    %v80 = vld [vmem:[#allocation5 + $0x28] sm:$0xff]
    %v81 = vld [vmem:[#allocation5 + $0x30] sm:$0xff]
    %v82 = vld [vmem:[#allocation5 + $0x38] sm:$0xff]
    %v83 = vld [vmem:[#allocation5 + $0x40] sm:$0xff]
    %v84 = vld [vmem:[#allocation5 + $0x48] sm:$0xff]
    %v85 = vld [vmem:[#allocation5 + $0x50] sm:$0xff]
    %v86 = vld [vmem:[#allocation5 + $0x58] sm:$0xff]
    %v87 = vld [vmem:[#allocation5 + $0x60] sm:$0xff]
    %v88 = vld [vmem:[#allocation5 + $0x68] sm:$0xff]
    %v89 = vld [vmem:[#allocation5 + $0x70] sm:$0xff]
    %v90 = vld [vmem:[#allocation5 + $0x78] sm:$0xff]
    %v91 = vld [vmem:[%s2] sm:$0x3]
    %v93 = vlaneseq
    %v94 = vshrl.u32 %v93, 7
    %v95 = vsub.s32 0, %v94
    %v96 = vrot.slane %v91, %v95
    %v97 = vlaneseq
    %v98 = vshrl.u32 %v97, 7
    %v99 = vsub.s32 1, %v98
    %v100 = vrot.slane %v91, %v99
    %v119 = vunpack.c.l.b16 %v75
    %v120 = vunpack.c.h.b16 %v75
    %v121 = vunpack.c.l.b16 %v76
    %v122 = vunpack.c.h.b16 %v76
    %v123 = vunpack.c.l.b16 %v77
    %v124 = vunpack.c.h.b16 %v77
    %v125 = vunpack.c.l.b16 %v78
    %v126 = vunpack.c.h.b16 %v78
    %v127 = vunpack.c.l.b16 %v79
    %v128 = vunpack.c.h.b16 %v79
    %v129 = vunpack.c.l.b16 %v80
    %v130 = vunpack.c.h.b16 %v80
    %v131 = vunpack.c.l.b16 %v81
    %v132 = vunpack.c.h.b16 %v81
    %v133 = vunpack.c.l.b16 %v82
    %v134 = vunpack.c.h.b16 %v82
    %v135 = vunpack.c.l.b16 %v83
    %v136 = vunpack.c.h.b16 %v83
    %v137 = vunpack.c.l.b16 %v84
    %v138 = vunpack.c.h.b16 %v84
    %v139 = vunpack.c.l.b16 %v85
    %v140 = vunpack.c.h.b16 %v85
    %v141 = vunpack.c.l.b16 %v86
    %v142 = vunpack.c.h.b16 %v86
    %v143 = vunpack.c.l.b16 %v87
    %v144 = vunpack.c.h.b16 %v87
    %v145 = vunpack.c.l.b16 %v88
    %v146 = vunpack.c.h.b16 %v88
    %v147 = vunpack.c.l.b16 %v89
    %v148 = vunpack.c.h.b16 %v89
    %v149 = vunpack.c.l.b16 %v90
    %v150 = vunpack.c.h.b16 %v90
    %v151 = vpack.c.b16 %v121, %v119
    %v152 = vpack.c.b16 %v122, %v120
    %v153 = vpack.c.b16 %v125, %v123
    %v154 = vpack.c.b16 %v126, %v124
    %v155 = vpack.c.b16 %v129, %v127
    %v156 = vpack.c.b16 %v130, %v128
    %v157 = vpack.c.b16 %v133, %v131
    %v158 = vpack.c.b16 %v134, %v132
    %v159 = vpack.c.b16 %v137, %v135
    %v160 = vpack.c.b16 %v138, %v136
    %v161 = vpack.c.b16 %v141, %v139
    %v162 = vpack.c.b16 %v142, %v140
    %v163 = vpack.c.b16 %v145, %v143
    %v164 = vpack.c.b16 %v146, %v144
    %v165 = vpack.c.b16 %v149, %v147
    %v166 = vpack.c.b16 %v150, %v148
    %183 = vmatprep.subr.bf16.mxu0 %v152
    %184 = vmatpush1.bf16.msra.mxu0 %v151
    %185 = vmatprep.subr.bf16.mxu0 %v154
    %186 = vmatpush1.bf16.msra.mxu0 %v153
    %187 = vmatprep.subr.bf16.mxu0 %v156
    %188 = vmatpush1.bf16.msra.mxu0 %v155
    %189 = vmatprep.subr.bf16.mxu0 %v158
    %190 = vmatpush1.bf16.msra.mxu0 %v157
    %191 = vmatprep.subr.bf16.mxu0 %v160
    %192 = vmatpush1.bf16.msra.mxu0 %v159
    %193 = vmatprep.subr.bf16.mxu0 %v162
    %194 = vmatpush1.bf16.msra.mxu0 %v161
    %195 = vmatprep.subr.bf16.mxu0 %v164
    %196 = vmatpush1.bf16.msra.mxu0 %v163
    %197 = vmatprep.subr.bf16.mxu0 %v166
    %198 = vmatpush1.bf16.msra.mxu0 %v165
    %199 = vmatprep.subr.bf16.mxu0 0
    %200 = vmatpush1.bf16.msra.mxu0 0
    %201 = vmatprep.subr.bf16.mxu0 0
    %202 = vmatpush1.bf16.msra.mxu0 0
    %203 = vmatprep.subr.bf16.mxu0 0
    %204 = vmatpush1.bf16.msra.mxu0 0
    %205 = vmatprep.subr.bf16.mxu0 0
    %206 = vmatpush1.bf16.msra.mxu0 0
    %207 = vmatprep.subr.bf16.mxu0 0
    %208 = vmatpush1.bf16.msra.mxu0 0
    %209 = vmatprep.subr.bf16.mxu0 0
    %210 = vmatpush1.bf16.msra.mxu0 0
    %211 = vmatprep.subr.bf16.mxu0 0
    %212 = vmatpush1.bf16.msra.mxu0 0
    %213 = vmatprep.subr.bf16.mxu0 0
    %214 = vmatpush1.bf16.msra.mxu0 0
    %215 = vmatprep.mubr.bf16.mxu0 0
    %216 = vmatmul.mubr.bf16.gmra.mrb[0].mxu0 %v73
    %v217 = vpop.f32.mrb[0].mxu0
    %v218 = vadd.f32 %v96, %v217
    %v219 = vpop.f32.mrb[0].mxu0
    %v220 = vadd.f32 %v100, %v219
    %v221 = vpop.f32.mrb[0].mxu0
    %v222 = vadd.f32 %v96, %v221
    %v223 = vpop.f32.mrb[0].mxu0
    %v224 = vadd.f32 %v100, %v223
    %225 = vmatprep.mubr.bf16.mxu0 0
    %226 = vmatmul.mubr.bf16.gmra.mrb[0].mxu0 %v74
    %v227 = vpop.f32.mrb[0].mxu0
    %v228 = vadd.f32 %v96, %v227
    %v229 = vpop.f32.mrb[0].mxu0
    %v230 = vadd.f32 %v100, %v229
    %v231 = vpop.f32.mrb[0].mxu0
    %v232 = vadd.f32 %v96, %v231
    %v233 = vpop.f32.mrb[0].mxu0
    %v234 = vadd.f32 %v100, %v233
    %235 = vdwg.mxu0
    %v236 = vxor.u32 %v220, 2147483648
    %v237 = vxor.u32 %v224, 2147483648
    %v238 = vxor.u32 %v230, 2147483648
    %v239 = vxor.u32 %v234, 2147483648
    %v240 = vmul.f32 %v236, 1.442695
    %v241 = vpow.pop %v240
    %v242 = vmul.f32 %v237, 1.442695
    %v243 = vpow.pop %v242
    %v244 = vmul.f32 %v238, 1.442695
    %v245 = vpow.pop %v244
    %v246 = vmul.f32 %v239, 1.442695
    %v247 = vpow.pop %v246
    %v248 = vadd.f32 %v241, 1.0
    %v249 = vadd.f32 %v243, 1.0
    %v250 = vadd.f32 %v245, 1.0
    %v251 = vadd.f32 %v247, 1.0
    %v252 = vrcp.pop %v248
    %v253 = vmul.f32 1.0, %v252
    %v254 = vrcp.pop %v249
    %v255 = vmul.f32 1.0, %v254
    %v256 = vrcp.pop %v250
    %v257 = vmul.f32 1.0, %v256
    %v258 = vrcp.pop %v251
    %v259 = vmul.f32 1.0, %v258
    %v260 = vmul.f32 %v218, %v253
    %v261 = vmul.f32 %v222, %v255
    %v262 = vmul.f32 %v228, %v257
    %v263 = vmul.f32 %v232, %v259
    %v264 = vld [vmem:[%s3] sm:$0x1]
    %v265 = vld [vmem:[%s3 + $0x1] sm:$0x1]
    %v266 = vld [vmem:[%s3 + $0x2] sm:$0x1]
    %v267 = vld [vmem:[%s3 + $0x3] sm:$0x1]
    %v268 = vld [vmem:[%s3 + $0x4] sm:$0x1]
    %v269 = vld [vmem:[%s3 + $0x5] sm:$0x1]
    %v270 = vld [vmem:[%s3 + $0x6] sm:$0x1]
    %v271 = vlaneseq
    %v272 = vshrl.u32 %v271, 7
    %v273 = vadd.s32 %v272, 8
    %v274 = vlaneseq
    %v275 = vshrl.u32 %v274, 7
    %v276 = vsub.s32 0, %v275
    %v277 = vrot.slane %v267, %v276
    %v278 = vmul.f32 %v260, %v277
    %v279 = vmul.f32 %v261, %v277
    %v280 = vmul.f32 %v262, %v277
    %v281 = vmul.f32 %v263, %v277
    %v282 = vrot.slane %v260, 5
    %v283 = vrot.slane %v261, 5
    %v284 = vrot.slane %v262, 5
    %v285 = vrot.slane %v263, 5
    %vm286 = vcmp.lt.s32.totalorder %v272, 3
    %v287 = vsel %vm286, %v284, %v285
    %v288 = vsel %vm286, %v283, %v284
    %v289 = vsel %vm286, %v282, %v283
    %v290 = vsel %vm286, %v285, %v282
    %vm291 = vcmp.ge.s32.totalorder %v272, 3
    %vm292 = vcmp.ge.s32.totalorder %v273, 3
    %v293 = vsel %vm291, %v290, 0.0
    %v294 = vsel %vm292, %v289, 0.0
    %v295 = vsel %vm291, %v288, 0.0
    %v296 = vsel %vm292, %v287, 0.0
    %v297 = vlaneseq
    %v298 = vshrl.u32 %v297, 7
    %v299 = vsub.s32 0, %v298
    %v300 = vrot.slane %v264, %v299
    %v301 = vmul.f32 %v293, %v300
    %v302 = vmul.f32 %v294, %v300
    %v303 = vmul.f32 %v295, %v300
    %v304 = vmul.f32 %v296, %v300
    %v305 = vadd.f32 %v278, %v301
    %v306 = vadd.f32 %v279, %v302
    %v307 = vadd.f32 %v280, %v303
    %v308 = vadd.f32 %v281, %v304
    %v309 = vrot.slane %v260, 6
    %v310 = vrot.slane %v261, 6
    %v311 = vrot.slane %v262, 6
    %v312 = vrot.slane %v263, 6
    %vm313 = vcmp.lt.s32.totalorder %v272, 2
    %v314 = vsel %vm313, %v311, %v312
    %v315 = vsel %vm313, %v310, %v311
    %v316 = vsel %vm313, %v309, %v310
    %v317 = vsel %vm313, %v312, %v309
    %vm318 = vcmp.ge.s32.totalorder %v272, 2
    %vm319 = vcmp.ge.s32.totalorder %v273, 2
    %v320 = vsel %vm318, %v317, 0.0
    %v321 = vsel %vm319, %v316, 0.0
    %v322 = vsel %vm318, %v315, 0.0
    %v323 = vsel %vm319, %v314, 0.0
    %v324 = vlaneseq
    %v325 = vshrl.u32 %v324, 7
    %v326 = vsub.s32 0, %v325
    %v327 = vrot.slane %v265, %v326
    %v328 = vmul.f32 %v320, %v327
    %v329 = vmul.f32 %v321, %v327
    %v330 = vmul.f32 %v322, %v327
    %v331 = vmul.f32 %v323, %v327
    %v332 = vadd.f32 %v305, %v328
    %v333 = vadd.f32 %v306, %v329
    %v334 = vadd.f32 %v307, %v330
    %v335 = vadd.f32 %v308, %v331
    %v336 = vrot.slane %v260, 7
    %v337 = vrot.slane %v261, 7
    %v338 = vrot.slane %v262, 7
    %v339 = vrot.slane %v263, 7
    %vm340 = vcmp.lt.s32.totalorder %v272, 1
    %v341 = vsel %vm340, %v338, %v339
    %v342 = vsel %vm340, %v337, %v338
    %v343 = vsel %vm340, %v336, %v337
    %v344 = vsel %vm340, %v339, %v336
    %vm345 = vcmp.ge.s32.totalorder %v272, 1
    %vm346 = vcmp.ge.s32.totalorder %v273, 1
    %v347 = vsel %vm345, %v344, 0.0
    %v348 = vsel %vm346, %v343, 0.0
    %v349 = vsel %vm345, %v342, 0.0
    %v350 = vsel %vm346, %v341, 0.0
    %v351 = vlaneseq
    %v352 = vshrl.u32 %v351, 7
    %v353 = vsub.s32 0, %v352
    %v354 = vrot.slane %v266, %v353
    %v355 = vmul.f32 %v347, %v354
    %v356 = vmul.f32 %v348, %v354
    %v357 = vmul.f32 %v349, %v354
    %v358 = vmul.f32 %v350, %v354
    %v359 = vadd.f32 %v332, %v355
    %v360 = vadd.f32 %v333, %v356
    %v361 = vadd.f32 %v334, %v357
    %v362 = vadd.f32 %v335, %v358
    %v363 = vrot.slane %v260, 1
    %v364 = vrot.slane %v261, 1
    %v365 = vrot.slane %v262, 1
    %v366 = vrot.slane %v263, 1
    %vm367 = vcmp.lt.s32.totalorder %v272, 7
    %v368 = vsel %vm367, %v365, %v366
    %v369 = vsel %vm367, %v364, %v365
    %v370 = vsel %vm367, %v363, %v364
    %v371 = vsel %vm367, %v366, %v363
    %vm372 = vcmp.lt.s32.totalorder %v272, 15
    %vm373 = vcmp.lt.s32.totalorder %v273, 15
    %v374 = vsel %vm372, %v370, 0.0
    %v375 = vsel %vm373, %v369, 0.0
    %v376 = vsel %vm372, %v368, 0.0
    %v377 = vsel %vm373, %v371, 0.0
    %v378 = vlaneseq
    %v379 = vshrl.u32 %v378, 7
    %v380 = vsub.s32 0, %v379
    %v381 = vrot.slane %v268, %v380
    %v382 = vmul.f32 %v374, %v381
    %v383 = vmul.f32 %v375, %v381
    %v384 = vmul.f32 %v376, %v381
    %v385 = vmul.f32 %v377, %v381
    %v386 = vadd.f32 %v359, %v382
    %v387 = vadd.f32 %v360, %v383
    %v388 = vadd.f32 %v361, %v384
    %v389 = vadd.f32 %v362, %v385
    %v390 = vrot.slane %v260, 2
    %v391 = vrot.slane %v261, 2
    %v392 = vrot.slane %v262, 2
    %v393 = vrot.slane %v263, 2
    %vm394 = vcmp.lt.s32.totalorder %v272, 6
    %v395 = vsel %vm394, %v392, %v393
    %v396 = vsel %vm394, %v391, %v392
    %v397 = vsel %vm394, %v390, %v391
    %v398 = vsel %vm394, %v393, %v390
    %vm399 = vcmp.lt.s32.totalorder %v272, 14
    %vm400 = vcmp.lt.s32.totalorder %v273, 14
    %v401 = vsel %vm399, %v397, 0.0
    %v402 = vsel %vm400, %v396, 0.0
    %v403 = vsel %vm399, %v395, 0.0
    %v404 = vsel %vm400, %v398, 0.0
    %v405 = vlaneseq
    %v406 = vshrl.u32 %v405, 7
    %v407 = vsub.s32 0, %v406
    %v408 = vrot.slane %v269, %v407
    %v409 = vmul.f32 %v401, %v408
    %v410 = vmul.f32 %v402, %v408
    %v411 = vmul.f32 %v403, %v408
    %v412 = vmul.f32 %v404, %v408
    %v413 = vadd.f32 %v386, %v409
    %v414 = vadd.f32 %v387, %v410
    %v415 = vadd.f32 %v388, %v411
    %v416 = vadd.f32 %v389, %v412
    %v417 = vrot.slane %v260, 3
    %v418 = vrot.slane %v261, 3
    %v419 = vrot.slane %v262, 3
    %v420 = vrot.slane %v263, 3
    %vm421 = vcmp.lt.s32.totalorder %v272, 5
    %v422 = vsel %vm421, %v419, %v420
    %v423 = vsel %vm421, %v418, %v419
    %v424 = vsel %vm421, %v417, %v418
    %v425 = vsel %vm421, %v420, %v417
    %vm426 = vcmp.lt.s32.totalorder %v272, 13
    %vm427 = vcmp.lt.s32.totalorder %v273, 13
    %v428 = vsel %vm426, %v424, 0.0
    %v429 = vsel %vm427, %v423, 0.0
    %v430 = vsel %vm426, %v422, 0.0
    %v431 = vsel %vm427, %v425, 0.0
    %v432 = vlaneseq
    %v433 = vshrl.u32 %v432, 7
    %v434 = vsub.s32 0, %v433
    %v435 = vrot.slane %v270, %v434
    %v436 = vmul.f32 %v428, %v435
    %v437 = vmul.f32 %v429, %v435
    %v438 = vmul.f32 %v430, %v435
    %v439 = vmul.f32 %v431, %v435
    %v440 = vadd.f32 %v413, %v436
    %v441 = vadd.f32 %v414, %v437
    %v442 = vadd.f32 %v415, %v438
    %v443 = vadd.f32 %v416, %v439
    %v444 = vld [vmem:[%s4] sm:$0x1]
    %v446 = vlaneseq
    %v447 = vshrl.u32 %v446, 7
    %v448 = vsub.s32 0, %v447
    %v449 = vrot.slane %v444, %v448
    %v451 = vadd.f32 %v440, %v449
    %v452 = vadd.f32 %v441, %v449
    %v453 = vadd.f32 %v442, %v449
    %v454 = vadd.f32 %v443, %v449
    %v455 = vxor.u32 %v451, 2147483648
    %v456 = vxor.u32 %v452, 2147483648
    %v457 = vxor.u32 %v453, 2147483648
    %v458 = vxor.u32 %v454, 2147483648
    %v459 = vmul.f32 %v455, 1.442695
    %v460 = vpow.pop %v459
    %v461 = vmul.f32 %v456, 1.442695
    %v462 = vpow.pop %v461
    %v463 = vmul.f32 %v457, 1.442695
    %v464 = vpow.pop %v463
    %v465 = vmul.f32 %v458, 1.442695
    %v466 = vpow.pop %v465
    %v467 = vadd.f32 %v460, 1.0
    %v468 = vadd.f32 %v462, 1.0
    %v469 = vadd.f32 %v464, 1.0
    %v470 = vadd.f32 %v466, 1.0
    %v471 = vrcp.pop %v467
    %v472 = vmul.f32 1.0, %v471
    %v473 = vrcp.pop %v468
    %v474 = vmul.f32 1.0, %v473
    %v475 = vrcp.pop %v469
    %v476 = vmul.f32 1.0, %v475
    %v477 = vrcp.pop %v470
    %v478 = vmul.f32 1.0, %v477
    %v479 = vmul.f32 %v451, %v472
    %v480 = vmul.f32 %v452, %v474
    %v481 = vmul.f32 %v453, %v476
    %v482 = vmul.f32 %v454, %v478
    %v483 = vpack.c.bf16 %v480, %v479
    %v484 = vpack.c.bf16 %v482, %v481
    %v485 = vld [vmem:[#allocation7] sm:$0xf]
    %v486 = vld [vmem:[#allocation7 + $0x4] sm:$0xf]
    %v487 = vld [vmem:[#allocation7 + $0x8] sm:$0xf]
    %v488 = vld [vmem:[#allocation7 + $0xc] sm:$0xf]
    %v489 = vld [vmem:[#allocation7 + $0x10] sm:$0xf]
    %v490 = vld [vmem:[#allocation7 + $0x14] sm:$0xf]
    %v491 = vld [vmem:[#allocation7 + $0x18] sm:$0xf]
    %v492 = vld [vmem:[#allocation7 + $0x1c] sm:$0xf]
    %v493 = vld [vmem:[#allocation7 + $0x20] sm:$0xf]
    %v494 = vld [vmem:[#allocation7 + $0x24] sm:$0xf]
    %v495 = vld [vmem:[#allocation7 + $0x28] sm:$0xf]
    %v496 = vld [vmem:[#allocation7 + $0x2c] sm:$0xf]
    %v497 = vld [vmem:[#allocation7 + $0x30] sm:$0xf]
    %v498 = vld [vmem:[#allocation7 + $0x34] sm:$0xf]
    %v499 = vld [vmem:[#allocation7 + $0x38] sm:$0xf]
    %v500 = vld [vmem:[#allocation7 + $0x3c] sm:$0xf]
    %v501 = vld [vmem:[%s6] sm:$0x1]
    %v503 = vlaneseq
    %v504 = vshrl.u32 %v503, 7
    %v505 = vsub.s32 0, %v504
    %v506 = vrot.slane %v501, %v505
    %v524 = vunpack.c.l.b16 %v485
    %v525 = vunpack.c.l.b16 %v486
    %v526 = vunpack.c.l.b16 %v487
    %v527 = vunpack.c.l.b16 %v488
    %v528 = vunpack.c.l.b16 %v489
    %v529 = vunpack.c.l.b16 %v490
    %v530 = vunpack.c.l.b16 %v491
    %v531 = vunpack.c.l.b16 %v492
    %v532 = vunpack.c.l.b16 %v493
    %v533 = vunpack.c.l.b16 %v494
    %v534 = vunpack.c.l.b16 %v495
    %v535 = vunpack.c.l.b16 %v496
    %v536 = vunpack.c.l.b16 %v497
    %v537 = vunpack.c.l.b16 %v498
    %v538 = vunpack.c.l.b16 %v499
    %v539 = vunpack.c.l.b16 %v500
    %v540 = vpack.c.b16 %v525, %v524
    %v541 = vpack.c.b16 %v527, %v526
    %v542 = vpack.c.b16 %v529, %v528
    %v543 = vpack.c.b16 %v531, %v530
    %v544 = vpack.c.b16 %v533, %v532
    %v545 = vpack.c.b16 %v535, %v534
    %v546 = vpack.c.b16 %v537, %v536
    %v547 = vpack.c.b16 %v539, %v538
    %556 = vmatprep.subr.bf16.mxu0 0
    %557 = vmatpush1.bf16.msra.mxu0 %v540
    %558 = vmatprep.subr.bf16.mxu0 0
    %559 = vmatpush1.bf16.msra.mxu0 %v541
    %560 = vmatprep.subr.bf16.mxu0 0
    %561 = vmatpush1.bf16.msra.mxu0 %v542
    %562 = vmatprep.subr.bf16.mxu0 0
    %563 = vmatpush1.bf16.msra.mxu0 %v543
    %564 = vmatprep.subr.bf16.mxu0 0
    %565 = vmatpush1.bf16.msra.mxu0 %v544
    %566 = vmatprep.subr.bf16.mxu0 0
    %567 = vmatpush1.bf16.msra.mxu0 %v545
    %568 = vmatprep.subr.bf16.mxu0 0
    %569 = vmatpush1.bf16.msra.mxu0 %v546
    %570 = vmatprep.subr.bf16.mxu0 0
    %571 = vmatpush1.bf16.msra.mxu0 %v547
    %572 = vmatprep.subr.bf16.mxu0 0
    %573 = vmatpush1.bf16.msra.mxu0 0
    %574 = vmatprep.subr.bf16.mxu0 0
    %575 = vmatpush1.bf16.msra.mxu0 0
    %576 = vmatprep.subr.bf16.mxu0 0
    %577 = vmatpush1.bf16.msra.mxu0 0
    %578 = vmatprep.subr.bf16.mxu0 0
    %579 = vmatpush1.bf16.msra.mxu0 0
    %580 = vmatprep.subr.bf16.mxu0 0
    %581 = vmatpush1.bf16.msra.mxu0 0
    %582 = vmatprep.subr.bf16.mxu0 0
    %583 = vmatpush1.bf16.msra.mxu0 0
    %584 = vmatprep.subr.bf16.mxu0 0
    %585 = vmatpush1.bf16.msra.mxu0 0
    %586 = vmatprep.subr.bf16.mxu0 0
    %587 = vmatpush1.bf16.msra.mxu0 0
    %588 = vmatprep.mubr.bf16.mxu0 0
    %589 = vmatmul.mubr.bf16.gmra.mrb[0].mxu0 %v483
    %v590 = vpop.f32.mrb[0].mxu0
    %v591 = vadd.f32 %v506, %v590
    %v592 = vpop.f32.mrb[0].mxu0
    %v593 = vpop.f32.mrb[0].mxu0
    %v594 = vadd.f32 %v506, %v593
    %v595 = vpop.f32.mrb[0].mxu0
    %596 = vmatprep.mubr.bf16.mxu0 0
    %597 = vmatmul.mubr.bf16.gmra.mrb[0].mxu0 %v484
    %v598 = vpop.f32.mrb[0].mxu0
    %v599 = vadd.f32 %v506, %v598
    %v600 = vpop.f32.mrb[0].mxu0
    %v601 = vpop.f32.mrb[0].mxu0
    %v602 = vadd.f32 %v506, %v601
    %v603 = vpop.f32.mrb[0].mxu0
    %604 = vdwg.mxu0
    %605 = vst [vmem:[#allocation8] sm:$0xff] %v591
    %606 = vst [vmem:[#allocation8 + $0x8] sm:$0xff] %v594
    %607 = vst [vmem:[#allocation8 + $0x10] sm:$0xff] %v599
    %608 = vst [vmem:[#allocation8 + $0x18] sm:$0xff] %v602
    // Predicated region
    $region42: #{tpu_custom_call.1} parent=1 // pred_check
      _
    $region43: #{tpu_custom_call.1} parent=1 // pred_check_branch
      %610 = sbr.rel (0) target = $region45
    $region44: #{tpu_custom_call.1} parent=1 // pred_region
      %s612 = ssub.s32 512, 512
      %613 = vsyncadd [#allocation4], %s612
      %s614 = sshll.u32 [#allocation8], 4
      %s615 = int_to_ptr.vmem [resolvable:$true] %s614
      %620 = dma.vmem_to_hbm [thread:$0]  %s615, 512, %s7, [#allocation4], 128, 128, 8
    $region45: #{tpu_custom_call.1} parent=1 // pred_fallthru
      _
    // Predicated region
    $region46: #{tpu_custom_call.1} parent=1 // pred_check
      _
    $region47: #{tpu_custom_call.1} parent=1 // pred_check_branch
      %622 = sbr.rel (0) target = $region49
    $region48: #{tpu_custom_call.1} parent=1 // pred_region
      %623 = dma.done [#allocation4], 512
    $region49: #{tpu_custom_call.1} parent=1 // pred_fallthru
      _
    %624 = vsyncpa [#allocation3], 1
    %625 = vsyncpa [#allocation6], 1
    %626 = vsyncpa [#allocation4], 1

</llo_original>
